<compile_context>
chip_gen: v6e
topology: v6e:2x2x1
jax: 0.10.0
libtpu: 0.0.40
codegen_flags: <defaults>
</compile_context>

<pallas_src>
import functools

import jax
import jax.numpy as jnp
from jax import lax
from jax.experimental import pallas as pl
from jax.experimental.pallas import tpu as pltpu

BN_EPS = 1e-5
_MAX_TILE = 2048     # columns per sequence tile (VMEM stays < a few MiB)
_TARGET_TILES = 4    # keep >= 2-4 tiles so v7x's 2 TensorCores both get work


def _cdiv(a, b):
    return -(-a // b)


def _pick_tile(seq_len):
    chunks = _cdiv(seq_len, 128)                                  # 128-col chunks
    per_tile = min(max(1, _cdiv(chunks, _TARGET_TILES)), _MAX_TILE // 128)
    return per_tile * 128


def _ann2d_kernel(xc_ref, xh_ref, w1_ref, b1_ref, w2_ref, b2_ref, w3_ref, b3_ref,
                  out_ref, *, bin_window_size, tile_s):
    """One sequence tile, feature-major.

    xc_ref : (D, T)    columns [i*T, (i+1)*T) of the front-zero-padded input
    xh_ref : (D, 128)  first 128 columns of block i+1 (only W-1 halo cols used)
    out_ref: (OUT, T)
    """
    W = bin_window_size
    T = tile_s

    cur = xc_ref[...]                                             # (D, T) f32

    # Sliding-window sum over time (time = lane axis), W-1 shifted adds:
    #   acc[:, s'] = sum_{j=0}^{W-1} xpad[:, i*T + s' + j]
    if W > 1:
        combined = jnp.concatenate([cur, xh_ref[...]], axis=1)    # (D, T+128)
        acc = cur
        for j in range(1, W):                                     # static unroll
            acc = acc + combined[:, j:j + T]
    else:
        acc = cur

    # fc1 -> ReLU   (BN1/BN2 are folded into w2/b2 and w3/b3 on the host)
    h1 = jnp.maximum(
        jnp.dot(w1_ref[...], acc, preferred_element_type=jnp.float32) + b1_ref[...],
        0.0)
    # fc2 (BN1-folded) -> (dropout = identity in eval) -> ReLU
    h2 = jnp.maximum(
        jnp.dot(w2_ref[...], h1, preferred_element_type=jnp.float32) + b2_ref[...],
        0.0)
    # fc3 (BN2-folded)
    out = jnp.dot(w3_ref[...], h2, preferred_element_type=jnp.float32) + b3_ref[...]

    # Steps before the rolling buffer fills (global step < W-1) emit exact
    # zeros.  Only the leading tile can contain such steps, so the mask is
    # gated and steady-state tiles do a plain lane-dense store.
    i = pl.program_id(0)

    @pl.when(i * T < W - 1)
    def _():
        col = i * T + lax.broadcasted_iota(jnp.int32, out.shape, 1)
        out_ref[...] = jnp.where(col >= W - 1, out, 0.0)

    @pl.when(i * T >= W - 1)
    def _():
        out_ref[...] = out


@functools.partial(jax.jit, static_argnames=("bin_window_size", "tile_s"))
def ann2d_forward(x3d, params, bin_window_size, tile_s=None):
    """x3d: (seq, 1, input_dim) float32. Returns (seq, output_dim) float32."""
    W = int(bin_window_size)
    S = x3d.shape[0]
    if tile_s is None:
        tile_s = _pick_tile(S)
    assert W >= 1 and W - 1 <= 128, "halo block holds at most 128 columns"
    assert tile_s % 128 == 0 and tile_s >= 128

    x = x3d[:, 0, :].astype(jnp.float32)                          # (S, D)
    D = x.shape[1]
    l1, l2 = params["w1"].shape[0], params["w2"].shape[0]
    out_dim = params["w3"].shape[0]

    num_tiles = _cdiv(S, tile_s)
    halo_blocks = tile_s // 128
    n_cols = num_tiles * tile_s + 128      # +128 zero cols: halo source for last tile

    # Layout plumbing (fused by XLA under jit): feature-major, W-1 leading zero
    # columns (the module's initial zero buffer / unfilled window), zero tail.
    x_fm = jnp.pad(x.T, ((0, 0), (W - 1, n_cols - (W - 1) - S)))

    # Fold eval-mode BatchNorm all the way into the next layer's weights/biases.
    f32 = lambda a: a.astype(jnp.float32)
    s1 = f32(params["g1"]) * lax.rsqrt(f32(params["rv1"]) + BN_EPS)
    t1 = f32(params["be1"]) - f32(params["rm1"]) * s1
    s2 = f32(params["g2"]) * lax.rsqrt(f32(params["rv2"]) + BN_EPS)
    t2 = f32(params["be2"]) - f32(params["rm2"]) * s2
    w1, b1 = f32(params["w1"]), f32(params["b1"])
    w2 = f32(params["w2"]) * s1[None, :]
    b2 = f32(params["b2"]) + f32(params["w2"]) @ t1
    w3 = f32(params["w3"]) * s2[None, :]
    b3 = f32(params["b3"]) + f32(params["w3"]) @ t2
    col = lambda v: v.reshape(-1, 1)                              # (feat,) -> (feat, 1)

    args = (x_fm, x_fm, w1, col(b1), w2, col(b2), w3, col(b3))

    def _full(a):                                                 # whole-array block
        return pl.BlockSpec(a.shape, lambda i: (0, 0))

    in_specs = [
        pl.BlockSpec((D, tile_s), lambda i: (0, i)),                     # current tile
        pl.BlockSpec((D, 128), lambda i: (0, (i + 1) * halo_blocks)),    # 128-col halo
    ] + [_full(a) for a in args[2:]]

    out_specs = pl.BlockSpec((out_dim, tile_s), lambda i: (0, i))

    steps = num_tiles * tile_s
    flops = 2 * steps * (D * l1 + l1 * l2 + l2 * out_dim) + steps * D * (W - 1)
    bytes_accessed = 4 * (D * steps + num_tiles * D * 128 + out_dim * steps
                          + D * l1 + l1 * l2 + l2 * out_dim + l1 + l2 + out_dim)

    # Derived VMEM budget: double-buffered I/O tiles + weight blocks + live
    # intermediates, with margin; clamped <= 32 MiB (v7x physical VMEM = 64 MiB).
    vmem_need = (2 * 4 * (D * tile_s + D * 128 + out_dim * tile_s)
                 + 2 * 4 * (l1 * D + l1 + l2 * l1 + l2 + out_dim * l2 + out_dim)
                 + 4 * tile_s * (3 * D + l1 + l2) + (2 << 20))
    vmem_limit = int(min(32 * 1024 * 1024, max(16 * 1024 * 1024, 4 * vmem_need)))

    out_fm = pl.pallas_call(
        functools.partial(_ann2d_kernel, bin_window_size=W, tile_s=tile_s),
        out_shape=jax.ShapeDtypeStruct((out_dim, steps), jnp.float32),
        grid_spec=pltpu.PrefetchScalarGridSpec(
            num_scalar_prefetch=0,
            grid=(num_tiles,),
            in_specs=in_specs,
            out_specs=out_specs,
        ),
        compiler_params=pltpu.CompilerParams(
            dimension_semantics=("parallel",),
            vmem_limit_bytes=vmem_limit,
        ),
        cost_estimate=pl.CostEstimate(
            flops=int(flops), transcendentals=0,
            bytes_accessed=int(bytes_accessed)),
    )(*args)

    return out_fm[:, :S].T                                        # (S, out_dim)


def reference_forward(x3d, params, bin_window_size):
    """Pure-JAX transcription of the PyTorch loop (eval mode), time-major."""
    W = int(bin_window_size)
    x = x3d[:, 0, :].astype(jnp.float32)                          # (S, D)
    S = x.shape[0]
    xp = jnp.pad(x, ((W - 1, 0), (0, 0)))                         # initial zero buffer
    acc = xp[W - 1:W - 1 + S]
    for j in range(1, W):
        acc = acc + xp[W - 1 - j:W - 1 - j + S]                   # rolling-buffer sum
    h1 = jnp.maximum(acc @ params["w1"].T + params["b1"], 0.0)
    h1 = (h1 - params["rm1"]) / jnp.sqrt(params["rv1"] + BN_EPS) * params["g1"] + params["be1"]
    h2 = jnp.maximum(h1 @ params["w2"].T + params["b2"], 0.0)
    h2 = (h2 - params["rm2"]) / jnp.sqrt(params["rv2"] + BN_EPS) * params["g2"] + params["be2"]
    out = h2 @ params["w3"].T + params["b3"]
    step = jnp.arange(S)[:, None]
    return jnp.where(step >= W - 1, out, 0.0)                     # unfilled buffer -> 0


def init_params(key, input_dim, layer1, layer2, output_dim):
    ks = jax.random.split(key, 16)
    return {
        "w1": 0.1 * jax.random.normal(ks[0], (layer1, input_dim), jnp.float32),
        "b1": 0.1 * jax.random.normal(ks[1], (layer1,), jnp.float32),
        "w2": 0.1 * jax.random.normal(ks[2], (layer2, layer1), jnp.float32),
        "b2": 0.1 * jax.random.normal(ks[3], (layer2,), jnp.float32),
        "w3": 0.1 * jax.random.normal(ks[4], (output_dim, layer2), jnp.float32),
        "b3": 0.1 * jax.random.normal(ks[5], (output_dim,), jnp.float32),
        # BatchNorm affine params + non-trivial running stats (eval mode).
        "g1": 1.0 + 0.1 * jax.random.normal(ks[6], (layer1,), jnp.float32),
        "be1": 0.1 * jax.random.normal(ks[7], (layer1,), jnp.float32),
        "rm1": 0.1 * jax.random.normal(ks[8], (layer1,), jnp.float32),
        "rv1": jax.random.uniform(ks[9], (layer1,), jnp.float32, 0.5, 1.5),
        "g2": 1.0 + 0.1 * jax.random.normal(ks[10], (layer2,), jnp.float32),
        "be2": 0.1 * jax.random.normal(ks[11], (layer2,), jnp.float32),
        "rm2": 0.1 * jax.random.normal(ks[12], (layer2,), jnp.float32),
        "rv2": jax.random.uniform(ks[13], (layer2,), jnp.float32, 0.5, 1.5),
    }


if __name__ == "__main__":
    def run_case(seq_len, input_dim, layer1, layer2, output_dim, bin_window, key):
        sampling_rate = 0.004
        W = int(bin_window / sampling_rate)
        kx, kp = jax.random.split(key)
        x = jax.random.normal(kx, (seq_len, 1, input_dim), jnp.float32)
        params = init_params(kp, input_dim, layer1, layer2, output_dim)

        out = ann2d_forward(x, params, bin_window_size=W)
        out = jax.block_until_ready(out)

        ref = reference_forward(x, params, W)
        assert out.shape == (seq_len, output_dim)
        err = float(jnp.max(jnp.abs(out - ref)))
        assert bool(jnp.allclose(out, ref, atol=2e-4, rtol=2e-4)), f"max |err| = {err}"
        if W > 1:
            # Steps before the rolling buffer fills must be exactly zero.
            assert bool(jnp.all(out[:W - 1] == 0.0))

    key = jax.random.PRNGKey(0)
    k1, k2 = jax.random.split(key)
    # Small case: W=4, two 128-column tiles -> exercises the cross-tile halo.
    run_case(200, 16, 32, 48, 2, 0.016, k1)
    # Module-default window: W=50, auto tile=256, 4 tiles (both TCs on v7x).
    run_case(1000, 16, 32, 48, 2, 0.2, k2)

    print("KERNEL_OK")
</pallas_src>

<mosaic_0001>
module attributes {stable_mosaic.version = 11 : i64} {
  func.func @_ann2d_kernel(%arg0: i32, %arg1: memref<16x128xf32, #tpu.memory_space<vmem>>, %arg2: memref<16x128xf32, #tpu.memory_space<vmem>>, %arg3: memref<32x16xf32, #tpu.memory_space<vmem>>, %arg4: memref<32x1xf32, #tpu.memory_space<vmem>>, %arg5: memref<48x32xf32, #tpu.memory_space<vmem>>, %arg6: memref<48x1xf32, #tpu.memory_space<vmem>>, %arg7: memref<2x48xf32, #tpu.memory_space<vmem>>, %arg8: memref<2x1xf32, #tpu.memory_space<vmem>>, %arg9: memref<2x128xf32, #tpu.memory_space<vmem>>) attributes {dimension_semantics = [#tpu.dimension_semantics<parallel>], iteration_bounds = array<i64: 2>, scalar_prefetch = 0 : i64, scratch_operands = 0 : i64, tpu.core_type = #tpu.core_type<tc>, window_params = [{transform_indices = @transform_0, window_bounds = array<i64: 16, 128>}, {transform_indices = @transform_1, window_bounds = array<i64: 16, 128>}, {pipeline_mode = #tpu.pipeline_mode<synchronous>, transform_indices = @transform_2, window_bounds = array<i64: 32, 16>}, {pipeline_mode = #tpu.pipeline_mode<synchronous>, transform_indices = @transform_3, window_bounds = array<i64: 32, 1>}, {pipeline_mode = #tpu.pipeline_mode<synchronous>, transform_indices = @transform_4, window_bounds = array<i64: 48, 32>}, {pipeline_mode = #tpu.pipeline_mode<synchronous>, transform_indices = @transform_5, window_bounds = array<i64: 48, 1>}, {pipeline_mode = #tpu.pipeline_mode<synchronous>, transform_indices = @transform_6, window_bounds = array<i64: 2, 48>}, {pipeline_mode = #tpu.pipeline_mode<synchronous>, transform_indices = @transform_7, window_bounds = array<i64: 2, 1>}, {transform_indices = @transform_8, window_bounds = array<i64: 2, 128>}]} {
    %c0 = arith.constant 0 : index
    %c0_0 = arith.constant 0 : index
    %0 = vector.load %arg1[%c0, %c0_0] : memref<16x128xf32, #tpu.memory_space<vmem>>, vector<16x128xf32>
    %c0_1 = arith.constant 0 : index
    %c0_2 = arith.constant 0 : index
    %1 = vector.load %arg2[%c0_1, %c0_2] : memref<16x128xf32, #tpu.memory_space<vmem>>, vector<16x128xf32>
    %2 = tpu.concatenate %0, %1 in 1 : vector<16x128xf32>, vector<16x128xf32> -> vector<16x256xf32>
    %3 = vector.extract_strided_slice %2 {offsets = [0, 1], sizes = [16, 128], strides = [1, 1]} : vector<16x256xf32> to vector<16x128xf32>
    %4 = arith.addf %0, %3 : vector<16x128xf32>
    %5 = vector.extract_strided_slice %2 {offsets = [0, 2], sizes = [16, 128], strides = [1, 1]} : vector<16x256xf32> to vector<16x128xf32>
    %6 = arith.addf %4, %5 : vector<16x128xf32>
    %7 = vector.extract_strided_slice %2 {offsets = [0, 3], sizes = [16, 128], strides = [1, 1]} : vector<16x256xf32> to vector<16x128xf32>
    %8 = arith.addf %6, %7 : vector<16x128xf32>
    %c0_3 = arith.constant 0 : index
    %c0_4 = arith.constant 0 : index
    %9 = vector.load %arg3[%c0_3, %c0_4] : memref<32x16xf32, #tpu.memory_space<vmem>>, vector<32x16xf32>
    %cst = arith.constant dense<0.000000e+00> : vector<32x128xf32>
    %10 = tpu.matmul %9, %8, %cst {dimension_numbers = #tpu.dot_dimension_numbers<[1], [0], [0], [1], [0, 0, 1, 1], [], []>} : vector<32x16xf32>, vector<16x128xf32>, vector<32x128xf32> -> vector<32x128xf32>
    %c0_5 = arith.constant 0 : index
    %c0_6 = arith.constant 0 : index
    %11 = vector.load %arg4[%c0_5, %c0_6] : memref<32x1xf32, #tpu.memory_space<vmem>>, vector<32x1xf32>
    %12 = vector.broadcast %11 : vector<32x1xf32> to vector<32x128xf32>
    %13 = arith.addf %10, %12 : vector<32x128xf32>
    %cst_7 = arith.constant 0.000000e+00 : f32
    %14 = vector.broadcast %cst_7 : f32 to vector<32x128xf32>
    %15 = arith.maximumf %13, %14 : vector<32x128xf32>
    %c0_8 = arith.constant 0 : index
    %c0_9 = arith.constant 0 : index
    %16 = vector.load %arg5[%c0_8, %c0_9] : memref<48x32xf32, #tpu.memory_space<vmem>>, vector<48x32xf32>
    %cst_10 = arith.constant dense<0.000000e+00> : vector<48x128xf32>
    %17 = tpu.matmul %16, %15, %cst_10 {dimension_numbers = #tpu.dot_dimension_numbers<[1], [0], [0], [1], [0, 0, 1, 1], [], []>} : vector<48x32xf32>, vector<32x128xf32>, vector<48x128xf32> -> vector<48x128xf32>
    %c0_11 = arith.constant 0 : index
    %c0_12 = arith.constant 0 : index
    %18 = vector.load %arg6[%c0_11, %c0_12] : memref<48x1xf32, #tpu.memory_space<vmem>>, vector<48x1xf32>
    %19 = vector.broadcast %18 : vector<48x1xf32> to vector<48x128xf32>
    %20 = arith.addf %17, %19 : vector<48x128xf32>
    %cst_13 = arith.constant 0.000000e+00 : f32
    %21 = vector.broadcast %cst_13 : f32 to vector<48x128xf32>
    %22 = arith.maximumf %20, %21 : vector<48x128xf32>
    %c0_14 = arith.constant 0 : index
    %c0_15 = arith.constant 0 : index
    %23 = vector.load %arg7[%c0_14, %c0_15] : memref<2x48xf32, #tpu.memory_space<vmem>>, vector<2x48xf32>
    %cst_16 = arith.constant dense<0.000000e+00> : vector<2x128xf32>
    %24 = tpu.matmul %23, %22, %cst_16 {dimension_numbers = #tpu.dot_dimension_numbers<[1], [0], [0], [1], [0, 0, 1, 1], [], []>} : vector<2x48xf32>, vector<48x128xf32>, vector<2x128xf32> -> vector<2x128xf32>
    %c0_17 = arith.constant 0 : index
    %c0_18 = arith.constant 0 : index
    %25 = vector.load %arg8[%c0_17, %c0_18] : memref<2x1xf32, #tpu.memory_space<vmem>>, vector<2x1xf32>
    %26 = vector.broadcast %25 : vector<2x1xf32> to vector<2x128xf32>
    %27 = arith.addf %24, %26 : vector<2x128xf32>
    %c128_i32 = arith.constant 128 : i32
    %28 = arith.muli %arg0, %c128_i32 : i32
    %c3_i32 = arith.constant 3 : i32
    %29 = arith.cmpi slt, %28, %c3_i32 : i32
    %30 = arith.extui %29 : i1 to i32
    %c0_i32 = arith.constant 0 : i32
    %31 = arith.cmpi ne, %30, %c0_i32 : i32
    scf.if %31 {
      %c128_i32_22 = arith.constant 128 : i32
      %36 = arith.muli %arg0, %c128_i32_22 : i32
      %37 = tpu.iota {dimensions = array<i32: 1>} : vector<2x128xi32>
      %38 = vector.broadcast %36 : i32 to vector<2x128xi32>
      %39 = arith.addi %38, %37 : vector<2x128xi32>
      %c3_i32_23 = arith.constant 3 : i32
      %40 = vector.broadcast %c3_i32_23 : i32 to vector<2x128xi32>
      %41 = arith.cmpi sge, %39, %40 : vector<2x128xi32>
      %cst_24 = arith.constant 0.000000e+00 : f32
      %42 = vector.broadcast %cst_24 : f32 to vector<2x128xf32>
      %43 = arith.select %41, %27, %42 : vector<2x128xi1>, vector<2x128xf32>
      %c0_25 = arith.constant 0 : index
      %c0_26 = arith.constant 0 : index
      %44 = vector.load %arg9[%c0_25, %c0_26] : memref<2x128xf32, #tpu.memory_space<vmem>>, vector<2x128xf32>
      tpu.vector_store %arg9[%c0_25, %c0_26], %43 {strides = array<i32>} : memref<2x128xf32, #tpu.memory_space<vmem>>, vector<2x128xf32>,
    } else {
    }
    %c128_i32_19 = arith.constant 128 : i32
    %32 = arith.muli %arg0, %c128_i32_19 : i32
    %c3_i32_20 = arith.constant 3 : i32
    %33 = arith.cmpi sge, %32, %c3_i32_20 : i32
    %34 = arith.extui %33 : i1 to i32
    %c0_i32_21 = arith.constant 0 : i32
    %35 = arith.cmpi ne, %34, %c0_i32_21 : i32
    scf.if %35 {
      %c0_22 = arith.constant 0 : index
      %c0_23 = arith.constant 0 : index
      %36 = vector.load %arg9[%c0_22, %c0_23] : memref<2x128xf32, #tpu.memory_space<vmem>>, vector<2x128xf32>
      tpu.vector_store %arg9[%c0_22, %c0_23], %27 {strides = array<i32>} : memref<2x128xf32, #tpu.memory_space<vmem>>, vector<2x128xf32>,
    } else {
    }
    return
  }
  func.func @transform_0(%arg0: i32) -> (i32, i32) {
    %c0_i32 = arith.constant 0 : i32
    %c0_i32_0 = arith.constant 0 : i32
    return %c0_i32, %arg0 : i32, i32
  }
  func.func @transform_1(%arg0: i32) -> (i32, i32) {
    %c1_i32 = arith.constant 1 : i32
    %0 = arith.addi %arg0, %c1_i32 : i32
    %c1_i32_0 = arith.constant 1 : i32
    %1 = arith.muli %0, %c1_i32_0 : i32
    %c0_i32 = arith.constant 0 : i32
    %c0_i32_1 = arith.constant 0 : i32
    return %c0_i32, %1 : i32, i32
  }
  func.func @transform_2(%arg0: i32) -> (i32, i32) {
    %c0_i32 = arith.constant 0 : i32
    %c0_i32_0 = arith.constant 0 : i32
    %c0_i32_1 = arith.constant 0 : i32
    return %c0_i32, %c0_i32_0 : i32, i32
  }
  func.func @transform_3(%arg0: i32) -> (i32, i32) {
    %c0_i32 = arith.constant 0 : i32
    %c0_i32_0 = arith.constant 0 : i32
    %c0_i32_1 = arith.constant 0 : i32
    return %c0_i32, %c0_i32_0 : i32, i32
  }
  func.func @transform_4(%arg0: i32) -> (i32, i32) {
    %c0_i32 = arith.constant 0 : i32
    %c0_i32_0 = arith.constant 0 : i32
    %c0_i32_1 = arith.constant 0 : i32
    return %c0_i32, %c0_i32_0 : i32, i32
  }
  func.func @transform_5(%arg0: i32) -> (i32, i32) {
    %c0_i32 = arith.constant 0 : i32
    %c0_i32_0 = arith.constant 0 : i32
    %c0_i32_1 = arith.constant 0 : i32
    return %c0_i32, %c0_i32_0 : i32, i32
  }
  func.func @transform_6(%arg0: i32) -> (i32, i32) {
    %c0_i32 = arith.constant 0 : i32
    %c0_i32_0 = arith.constant 0 : i32
    %c0_i32_1 = arith.constant 0 : i32
    return %c0_i32, %c0_i32_0 : i32, i32
  }
  func.func @transform_7(%arg0: i32) -> (i32, i32) {
    %c0_i32 = arith.constant 0 : i32
    %c0_i32_0 = arith.constant 0 : i32
    %c0_i32_1 = arith.constant 0 : i32
    return %c0_i32, %c0_i32_0 : i32, i32
  }
  func.func @transform_8(%arg0: i32) -> (i32, i32) {
    %c0_i32 = arith.constant 0 : i32
    %c0_i32_0 = arith.constant 0 : i32
    return %c0_i32, %arg0 : i32, i32
  }
}

</mosaic_0001>

<llo_original>
// kernel: ann2d_forward.1
$region0: #{ann2d_forward.1}
  #allocation0 [shape = 'u32[]', space=smem, size = 0x4, offset = 0x4, fixed_abs, tag = 'smem constant byte address 0x4 - core index']
  #allocation1 [shape = 'u32[144,128]{1,0:T(1,128)}', space=vmem, size = 0x12000, scoped, tag = 'internal scratch']
  %s0 = inlined_call_operand.vmem [shape: f32[16,384], index: 0, kind: input, shape index: {}, may-alias: {0,1}]
  %s1 = inlined_call_operand.vmem [shape: f32[16,384], index: 1, kind: input, shape index: {}, may-alias: {0,1}]
  %s2 = inlined_call_operand.vmem [shape: f32[32,16], index: 2, kind: input, shape index: {}]
  %s3 = inlined_call_operand.vmem [shape: f32[32,1], index: 3, kind: input, shape index: {}]
  %s4 = inlined_call_operand.vmem [shape: f32[48,32], index: 4, kind: input, shape index: {}]
  %s5 = inlined_call_operand.vmem [shape: f32[48,1], index: 5, kind: input, shape index: {}]
  %s6 = inlined_call_operand.vmem [shape: f32[2,48], index: 6, kind: input, shape index: {}]
  %s7 = inlined_call_operand.vmem [shape: f32[2,1], index: 7, kind: input, shape index: {}]
  %s8 = inlined_call_operand.vmem [shape: f32[2,256], index: 8, kind: output, shape index: {}]
  %s9 = sld [smem:[#allocation0]]
  $region149: #{ann2d_forward.1} parent=0
    _
  %s11 = ssub.s32 1, %s9
  %s12 = scalar_select 0, %s11, %s9
  $region1: #{ann2d_forward.1} parent=0
    #allocation2 [shape = 'u8[16384]{0}', space=vmem, size = 0x4000, scoped, tag = 'input window, operand 0']
    #allocation3 [shape = 'u8[16384]{0}', space=vmem, size = 0x4000, scoped, tag = 'input window, operand 1']
    loop: start=0, step=1, limit=4
    $region2: #{ann2d_forward.1} parent=1 // loop_pre_header
      _
    $region3: #{ann2d_forward.1} parent=1 // loop_header
      %s14 = sphi 0, %s18
      %p15 = scmp.ge.s32.totalorder %s14, 4
      %s24 = sphi 0, %s26
      %s27 = sphi 0, %s24
      %s28 = sphi 0, %s27
      %s44 = sphi 0, %s28
      %s52 = sphi 0, %s54
      %s55 = sphi 0, %s52
      %s56 = sphi 0, %s55
      %s72 = sphi 0, %s56
      %s76 = sphi 0, %s76
      %s78 = sphi 0, %s76
      %s79 = sphi 0, %s78
      %s93 = sphi 0, %s79
      %s97 = sphi 0, %s97
      %s99 = sphi 0, %s97
      %s100 = sphi 0, %s99
      %s114 = sphi 0, %s100
      %s118 = sphi 0, %s118
      %s120 = sphi 0, %s118
      %s121 = sphi 0, %s120
      %s135 = sphi 0, %s121
      %s139 = sphi 0, %s139
      %s141 = sphi 0, %s139
      %s142 = sphi 0, %s141
      %s156 = sphi 0, %s142
      %s160 = sphi 0, %s160
      %s162 = sphi 0, %s160
      %s163 = sphi 0, %s162
      %s177 = sphi 0, %s163
      %s181 = sphi 0, %s181
      %s183 = sphi 0, %s181
      %s184 = sphi 0, %s183
      %s198 = sphi 0, %s184
      %s204 = sphi 0, %s206
      %s207 = sphi 0, %s204
      %s208 = sphi 0, %s207
      %s224 = sphi 0, %s208
    $region4: #{ann2d_forward.1} parent=1 // loop_header_branch
      %17 = sbr.rel (%p15) target = $region8
    $region5: #{ann2d_forward.1} parent=1 // loop_body
      %s19 = ssub.s32 %s14, 1
      %s20 = ssub.s32 %s14, 2
      %s21 = sadd.s32 %s14, 1
      %s22 = ssub.s32 %s14, %s21
      %p23 = scmp.eq.s32.totalorder %s22, 0
      %s25 = sadd.s32 %s24, 1
      %s26 = scalar_select %p23, %s24, %s25
      %p29 = pneg %p23
      %p30 = scmp.eq.s32.totalorder %s14, 1
      %p31 = por %p29, %p30
      %p32 = scmp.ne.s32.totalorder %s24, %s27
      %p33 = scmp.eq.s32.totalorder %s14, 0
      %p34 = por %p32, %p33
      %p35 = scmp.ne.s32.totalorder %s24, %s27
      %p36 = scmp.eq.s32.totalorder %s19, 1
      %p37 = por %p35, %p36
      %p38 = scmp.ne.s32.totalorder %s27, %s28
      %p39 = scmp.eq.s32.totalorder %s19, 0
      %p40 = por %p38, %p39
      %p41 = scmp.ne.s32.totalorder %s27, %s28
      %p42 = scmp.eq.s32.totalorder %s20, 1
      %p43 = por %p41, %p42
      %p45 = scmp.ne.s32.totalorder %s28, %s44
      %p46 = scmp.eq.s32.totalorder %s20, 0
      %p47 = por %p45, %p46
      %s48 = sadd.s32 %s14, 1
      %s49 = sadd.s32 %s21, 1
      %s50 = ssub.s32 %s48, %s49
      %p51 = scmp.eq.s32.totalorder %s50, 0
      %s53 = sadd.s32 %s52, 1
      %s54 = scalar_select %p51, %s52, %s53
      %p57 = pneg %p51
      %p58 = scmp.eq.s32.totalorder %s14, 1
      %p59 = por %p57, %p58
      %p60 = scmp.ne.s32.totalorder %s52, %s55
      %p61 = scmp.eq.s32.totalorder %s14, 0
      %p62 = por %p60, %p61
      %p63 = scmp.ne.s32.totalorder %s52, %s55
      %p64 = scmp.eq.s32.totalorder %s19, 1
      %p65 = por %p63, %p64
      %p66 = scmp.ne.s32.totalorder %s55, %s56
      %p67 = scmp.eq.s32.totalorder %s19, 0
      %p68 = por %p66, %p67
      %p69 = scmp.ne.s32.totalorder %s55, %s56
      %p70 = scmp.eq.s32.totalorder %s20, 1
      %p71 = por %p69, %p70
      %p73 = scmp.ne.s32.totalorder %s56, %s72
      %p74 = scmp.eq.s32.totalorder %s20, 0
      %p75 = por %p73, %p74
      %s77 = sadd.s32 %s76, 1
      %p80 = scmp.eq.s32.totalorder %s14, 1
      %p81 = scmp.ne.s32.totalorder %s76, %s78
      %p82 = scmp.eq.s32.totalorder %s14, 0
      %p83 = por %p81, %p82
      %p84 = scmp.ne.s32.totalorder %s76, %s78
      %p85 = scmp.eq.s32.totalorder %s19, 1
      %p86 = por %p84, %p85
      %p87 = scmp.ne.s32.totalorder %s78, %s79
      %p88 = scmp.eq.s32.totalorder %s19, 0
      %p89 = por %p87, %p88
      %p90 = scmp.ne.s32.totalorder %s78, %s79
      %p91 = scmp.eq.s32.totalorder %s20, 1
      %p92 = por %p90, %p91
      %p94 = scmp.ne.s32.totalorder %s79, %s93
      %p95 = scmp.eq.s32.totalorder %s20, 0
      %p96 = por %p94, %p95
      %s98 = sadd.s32 %s97, 1
      %p101 = scmp.eq.s32.totalorder %s14, 1
      %p102 = scmp.ne.s32.totalorder %s97, %s99
      %p103 = scmp.eq.s32.totalorder %s14, 0
      %p104 = por %p102, %p103
      %p105 = scmp.ne.s32.totalorder %s97, %s99
      %p106 = scmp.eq.s32.totalorder %s19, 1
      %p107 = por %p105, %p106
      %p108 = scmp.ne.s32.totalorder %s99, %s100
      %p109 = scmp.eq.s32.totalorder %s19, 0
      %p110 = por %p108, %p109
      %p111 = scmp.ne.s32.totalorder %s99, %s100
      %p112 = scmp.eq.s32.totalorder %s20, 1
      %p113 = por %p111, %p112
      %p115 = scmp.ne.s32.totalorder %s100, %s114
      %p116 = scmp.eq.s32.totalorder %s20, 0
      %p117 = por %p115, %p116
      %s119 = sadd.s32 %s118, 1
      %p122 = scmp.eq.s32.totalorder %s14, 1
      %p123 = scmp.ne.s32.totalorder %s118, %s120
      %p124 = scmp.eq.s32.totalorder %s14, 0
      %p125 = por %p123, %p124
      %p126 = scmp.ne.s32.totalorder %s118, %s120
      %p127 = scmp.eq.s32.totalorder %s19, 1
      %p128 = por %p126, %p127
      %p129 = scmp.ne.s32.totalorder %s120, %s121
      %p130 = scmp.eq.s32.totalorder %s19, 0
      %p131 = por %p129, %p130
      %p132 = scmp.ne.s32.totalorder %s120, %s121
      %p133 = scmp.eq.s32.totalorder %s20, 1
      %p134 = por %p132, %p133
      %p136 = scmp.ne.s32.totalorder %s121, %s135
      %p137 = scmp.eq.s32.totalorder %s20, 0
      %p138 = por %p136, %p137
      %s140 = sadd.s32 %s139, 1
      %p143 = scmp.eq.s32.totalorder %s14, 1
      %p144 = scmp.ne.s32.totalorder %s139, %s141
      %p145 = scmp.eq.s32.totalorder %s14, 0
      %p146 = por %p144, %p145
      %p147 = scmp.ne.s32.totalorder %s139, %s141
      %p148 = scmp.eq.s32.totalorder %s19, 1
      %p149 = por %p147, %p148
      %p150 = scmp.ne.s32.totalorder %s141, %s142
      %p151 = scmp.eq.s32.totalorder %s19, 0
      %p152 = por %p150, %p151
      %p153 = scmp.ne.s32.totalorder %s141, %s142
      %p154 = scmp.eq.s32.totalorder %s20, 1
      %p155 = por %p153, %p154
      %p157 = scmp.ne.s32.totalorder %s142, %s156
      %p158 = scmp.eq.s32.totalorder %s20, 0
      %p159 = por %p157, %p158
      %s161 = sadd.s32 %s160, 1
      %p164 = scmp.eq.s32.totalorder %s14, 1
      %p165 = scmp.ne.s32.totalorder %s160, %s162
      %p166 = scmp.eq.s32.totalorder %s14, 0
      %p167 = por %p165, %p166
      %p168 = scmp.ne.s32.totalorder %s160, %s162
      %p169 = scmp.eq.s32.totalorder %s19, 1
      %p170 = por %p168, %p169
      %p171 = scmp.ne.s32.totalorder %s162, %s163
      %p172 = scmp.eq.s32.totalorder %s19, 0
      %p173 = por %p171, %p172
      %p174 = scmp.ne.s32.totalorder %s162, %s163
      %p175 = scmp.eq.s32.totalorder %s20, 1
      %p176 = por %p174, %p175
      %p178 = scmp.ne.s32.totalorder %s163, %s177
      %p179 = scmp.eq.s32.totalorder %s20, 0
      %p180 = por %p178, %p179
      %s182 = sadd.s32 %s181, 1
      %p185 = scmp.eq.s32.totalorder %s14, 1
      %p186 = scmp.ne.s32.totalorder %s181, %s183
      %p187 = scmp.eq.s32.totalorder %s14, 0
      %p188 = por %p186, %p187
      %p189 = scmp.ne.s32.totalorder %s181, %s183
      %p190 = scmp.eq.s32.totalorder %s19, 1
      %p191 = por %p189, %p190
      %p192 = scmp.ne.s32.totalorder %s183, %s184
      %p193 = scmp.eq.s32.totalorder %s19, 0
      %p194 = por %p192, %p193
      %p195 = scmp.ne.s32.totalorder %s183, %s184
      %p196 = scmp.eq.s32.totalorder %s20, 1
      %p197 = por %p195, %p196
      %p199 = scmp.ne.s32.totalorder %s184, %s198
      %p200 = scmp.eq.s32.totalorder %s20, 0
      %p201 = por %p199, %p200
      %s202 = ssub.s32 %s14, %s21
      %p203 = scmp.eq.s32.totalorder %s202, 0
      %s205 = sadd.s32 %s204, 1
      %s206 = scalar_select %p203, %s204, %s205
      %p209 = pneg %p203
      %p210 = scmp.eq.s32.totalorder %s14, 1
      %p211 = por %p209, %p210
      %p212 = scmp.ne.s32.totalorder %s204, %s207
      %p213 = scmp.eq.s32.totalorder %s14, 0
      %p214 = por %p212, %p213
      %p215 = scmp.ne.s32.totalorder %s204, %s207
      %p216 = scmp.eq.s32.totalorder %s19, 1
      %p217 = por %p215, %p216
      %p218 = scmp.ne.s32.totalorder %s207, %s208
      %p219 = scmp.eq.s32.totalorder %s19, 0
      %p220 = por %p218, %p219
      %p221 = scmp.ne.s32.totalorder %s207, %s208
      %p222 = scmp.eq.s32.totalorder %s20, 1
      %p223 = por %p221, %p222
      %p225 = scmp.ne.s32.totalorder %s208, %s224
      %p226 = scmp.eq.s32.totalorder %s20, 0
      %p227 = por %p225, %p226
      %p228 = scmp.le.s32.totalorder 1, %s14
      %p229 = scmp.lt.s32.totalorder %s14, 3
      %p230 = pnand %p228, %p229
      %p231 = pneg %p230
      // Predicated region
      $region9: #{ann2d_forward.1} parent=5 // pred_check
        _
      $region10: #{ann2d_forward.1} parent=5 // pred_check_branch
        %233 = sbr.rel (%p230) target = $region12
      $region11: #{ann2d_forward.1} parent=5 // pred_region
        %s234 = ssub.s32 %s14, 1
        // Predicated region
        $region13: #{ann2d_forward.1} parent=11 // pred_check
          %p235 = pneg %p89
        $region14: #{ann2d_forward.1} parent=11 // pred_check_branch
          %237 = sbr.rel (%p235) target = $region16
        $region15: #{ann2d_forward.1} parent=11 // pred_region
          _
        $region16: #{ann2d_forward.1} parent=11 // pred_fallthru
          _
        // Predicated region
        $region17: #{ann2d_forward.1} parent=11 // pred_check
          %p238 = pneg %p110
        $region18: #{ann2d_forward.1} parent=11 // pred_check_branch
          %240 = sbr.rel (%p238) target = $region20
        $region19: #{ann2d_forward.1} parent=11 // pred_region
          _
        $region20: #{ann2d_forward.1} parent=11 // pred_fallthru
          _
        // Predicated region
        $region21: #{ann2d_forward.1} parent=11 // pred_check
          %p241 = pneg %p131
        $region22: #{ann2d_forward.1} parent=11 // pred_check_branch
          %243 = sbr.rel (%p241) target = $region24
        $region23: #{ann2d_forward.1} parent=11 // pred_region
          _
        $region24: #{ann2d_forward.1} parent=11 // pred_fallthru
          _
        // Predicated region
        $region25: #{ann2d_forward.1} parent=11 // pred_check
          %p244 = pneg %p152
        $region26: #{ann2d_forward.1} parent=11 // pred_check_branch
          %246 = sbr.rel (%p244) target = $region28
        $region27: #{ann2d_forward.1} parent=11 // pred_region
          _
        $region28: #{ann2d_forward.1} parent=11 // pred_fallthru
          _
        // Predicated region
        $region29: #{ann2d_forward.1} parent=11 // pred_check
          %p247 = pneg %p173
        $region30: #{ann2d_forward.1} parent=11 // pred_check_branch
          %249 = sbr.rel (%p247) target = $region32
        $region31: #{ann2d_forward.1} parent=11 // pred_region
          _
        $region32: #{ann2d_forward.1} parent=11 // pred_fallthru
          _
        // Predicated region
        $region33: #{ann2d_forward.1} parent=11 // pred_check
          %p250 = pneg %p194
        $region34: #{ann2d_forward.1} parent=11 // pred_check_branch
          %252 = sbr.rel (%p250) target = $region36
        $region35: #{ann2d_forward.1} parent=11 // pred_region
          _
        $region36: #{ann2d_forward.1} parent=11 // pred_fallthru
          _
      $region12: #{ann2d_forward.1} parent=5 // pred_fallthru
        _
      %p253 = scmp.lt.s32.totalorder %s14, 2
      // Predicated region
      $region37: #{ann2d_forward.1} parent=5 // pred_check
        %p254 = pneg %p253
      $region38: #{ann2d_forward.1} parent=5 // pred_check_branch
        %256 = sbr.rel (%p254) target = $region40
      $region39: #{ann2d_forward.1} parent=5 // pred_region
        // Predicated region
        $region41: #{ann2d_forward.1} parent=39 // pred_check
          %p257 = pneg %p34
        $region42: #{ann2d_forward.1} parent=39 // pred_check_branch
          %259 = sbr.rel (%p257) target = $region44
        $region43: #{ann2d_forward.1} parent=39 // pred_region
          %s260 = sand.u32 %s24, 1
          %s261 = sand.u32 %s24, 1
          %s262 = smul.addr %s261, 16
          %s263 = scalar_lea.vmem [#allocation2], %s262
          %s264 = smul.addr %s14, 8
          %s265 = scalar_lea.vmem %s0, %s264
          // Predicated region
          $region45: #{ann2d_forward.1} parent=43 // pred_check
            _
          $region46: #{ann2d_forward.1} parent=43 // pred_check_branch
            %267 = sbr.rel (0) target = $region48
          $region47: #{ann2d_forward.1} parent=43 // pred_region
            // Predicated region
            $region49: #{ann2d_forward.1} parent=47 // pred_check
              _
            $region50: #{ann2d_forward.1} parent=47 // pred_check_branch
              %269 = sbr.rel (0) target = $region52
            $region51: #{ann2d_forward.1} parent=47 // pred_region
              // Predicated region
              $region64: #{ann2d_forward.1} parent=51 // pred_check
                _
              $region65: #{ann2d_forward.1} parent=51 // pred_check_branch
                %287 = sbr.rel (0) target = $region67
              $region66: #{ann2d_forward.1} parent=51 // pred_region
                loop: start=0, step=1, limit=1
                $region68: #{ann2d_forward.1} parent=66 // loop_pre_header
                  _
                $region69: #{ann2d_forward.1} parent=66 // loop_header
                  %s289 = sphi 0, %s293
                  %p290 = scmp.ge.s32.totalorder %s289, 1
                  %s294 = sphi %s265, %s265
                  %s295 = sphi %s263, %s263
                $region70: #{ann2d_forward.1} parent=66 // loop_header_branch
                  %292 = sbr.rel (%p290) target = $region74
                $region71: #{ann2d_forward.1} parent=66 // loop_body
                  %v296 = vld [vmem:[%s294] sm:$0xff]
                  %297 = vst [vmem:[%s295] sm:$0xff] %v296
                  %v298 = vld [vmem:[%s294 + $0x18] sm:$0xff]
                  %299 = vst [vmem:[%s295 + $0x8] sm:$0xff] %v298
                $region72: #{ann2d_forward.1} parent=66 // loop_footer
                  %s293 = sadd.s32 1, %s289
                $region73: #{ann2d_forward.1} parent=66 // loop_footer_branch
                  %288 = sbr.rel target = $region69
                $region74: #{ann2d_forward.1} parent=66 // loop_exit
                  _
              $region67: #{ann2d_forward.1} parent=51 // pred_fallthru
                _
              // Predicated region
              $region75: #{ann2d_forward.1} parent=51 // pred_check
                _
              $region76: #{ann2d_forward.1} parent=51 // pred_check_branch
                %301 = sbr.rel target = $region78
              $region77: #{ann2d_forward.1} parent=51 // pred_region
                _
              $region78: #{ann2d_forward.1} parent=51 // pred_fallthru
                _
            $region52: #{ann2d_forward.1} parent=47 // pred_fallthru
              _
            // Predicated region
            $region53: #{ann2d_forward.1} parent=47 // pred_check
              _
            $region54: #{ann2d_forward.1} parent=47 // pred_check_branch
              %271 = sbr.rel target = $region56
            $region55: #{ann2d_forward.1} parent=47 // pred_region
              %s273 = ssub.s32 256, 1
              loop: start=0, step=1, limit=1
              $region57: #{ann2d_forward.1} parent=55 // loop_pre_header
                _
              $region58: #{ann2d_forward.1} parent=55 // loop_header
                %s275 = sphi 0, %s279
                %p276 = scmp.ge.s32.totalorder %s275, 1
                %s280 = sphi %s265, %s265
                %s281 = sphi %s263, %s263
              $region59: #{ann2d_forward.1} parent=55 // loop_header_branch
                %278 = sbr.rel (%p276) target = $region63
              $region60: #{ann2d_forward.1} parent=55 // loop_body
                %v282 = vld [vmem:[%s280] sm:%s273]
                %283 = vst [vmem:[%s281] sm:%s273] %v282
                %v284 = vld [vmem:[%s280 + $0x18] sm:%s273]
                %285 = vst [vmem:[%s281 + $0x8] sm:%s273] %v284
              $region61: #{ann2d_forward.1} parent=55 // loop_footer
                %s279 = sadd.s32 1, %s275
              $region62: #{ann2d_forward.1} parent=55 // loop_footer_branch
                %274 = sbr.rel target = $region58
              $region63: #{ann2d_forward.1} parent=55 // loop_exit
                _
            $region56: #{ann2d_forward.1} parent=47 // pred_fallthru
              _
          $region48: #{ann2d_forward.1} parent=43 // pred_fallthru
            _
          %302 = vnop
        $region44: #{ann2d_forward.1} parent=39 // pred_fallthru
          _
        // Predicated region
        $region79: #{ann2d_forward.1} parent=39 // pred_check
          %p303 = pneg %p62
        $region80: #{ann2d_forward.1} parent=39 // pred_check_branch
          %305 = sbr.rel (%p303) target = $region82
        $region81: #{ann2d_forward.1} parent=39 // pred_region
          %s306 = sand.u32 %s52, 1
          %s307 = sand.u32 %s52, 1
          %s308 = smul.addr %s307, 16
          %s309 = scalar_lea.vmem [#allocation3], %s308
          %s310 = sadd.s32 %s14, 1
          %s311 = smul.addr %s310, 8
          %s312 = scalar_lea.vmem %s1, %s311
          // Predicated region
          $region83: #{ann2d_forward.1} parent=81 // pred_check
            _
          $region84: #{ann2d_forward.1} parent=81 // pred_check_branch
            %314 = sbr.rel (0) target = $region86
          $region85: #{ann2d_forward.1} parent=81 // pred_region
            // Predicated region
            $region87: #{ann2d_forward.1} parent=85 // pred_check
              _
            $region88: #{ann2d_forward.1} parent=85 // pred_check_branch
              %316 = sbr.rel (0) target = $region90
            $region89: #{ann2d_forward.1} parent=85 // pred_region
              // Predicated region
              $region102: #{ann2d_forward.1} parent=89 // pred_check
                _
              $region103: #{ann2d_forward.1} parent=89 // pred_check_branch
                %334 = sbr.rel (0) target = $region105
              $region104: #{ann2d_forward.1} parent=89 // pred_region
                loop: start=0, step=1, limit=1
                $region106: #{ann2d_forward.1} parent=104 // loop_pre_header
                  _
                $region107: #{ann2d_forward.1} parent=104 // loop_header
                  %s336 = sphi 0, %s340
                  %p337 = scmp.ge.s32.totalorder %s336, 1
                  %s341 = sphi %s312, %s312
                  %s342 = sphi %s309, %s309
                $region108: #{ann2d_forward.1} parent=104 // loop_header_branch
                  %339 = sbr.rel (%p337) target = $region112
                $region109: #{ann2d_forward.1} parent=104 // loop_body
                  %v343 = vld [vmem:[%s341] sm:$0xff]
                  %344 = vst [vmem:[%s342] sm:$0xff] %v343
                  %v345 = vld [vmem:[%s341 + $0x18] sm:$0xff]
                  %346 = vst [vmem:[%s342 + $0x8] sm:$0xff] %v345
                $region110: #{ann2d_forward.1} parent=104 // loop_footer
                  %s340 = sadd.s32 1, %s336
                $region111: #{ann2d_forward.1} parent=104 // loop_footer_branch
                  %335 = sbr.rel target = $region107
                $region112: #{ann2d_forward.1} parent=104 // loop_exit
                  _
              $region105: #{ann2d_forward.1} parent=89 // pred_fallthru
                _
              // Predicated region
              $region113: #{ann2d_forward.1} parent=89 // pred_check
                _
              $region114: #{ann2d_forward.1} parent=89 // pred_check_branch
                %348 = sbr.rel target = $region116
              $region115: #{ann2d_forward.1} parent=89 // pred_region
                _
              $region116: #{ann2d_forward.1} parent=89 // pred_fallthru
                _
            $region90: #{ann2d_forward.1} parent=85 // pred_fallthru
              _
            // Predicated region
            $region91: #{ann2d_forward.1} parent=85 // pred_check
              _
            $region92: #{ann2d_forward.1} parent=85 // pred_check_branch
              %318 = sbr.rel target = $region94
            $region93: #{ann2d_forward.1} parent=85 // pred_region
              %s320 = ssub.s32 256, 1
              loop: start=0, step=1, limit=1
              $region95: #{ann2d_forward.1} parent=93 // loop_pre_header
                _
              $region96: #{ann2d_forward.1} parent=93 // loop_header
                %s322 = sphi 0, %s326
                %p323 = scmp.ge.s32.totalorder %s322, 1
                %s327 = sphi %s312, %s312
                %s328 = sphi %s309, %s309
              $region97: #{ann2d_forward.1} parent=93 // loop_header_branch
                %325 = sbr.rel (%p323) target = $region101
              $region98: #{ann2d_forward.1} parent=93 // loop_body
                %v329 = vld [vmem:[%s327] sm:%s320]
                %330 = vst [vmem:[%s328] sm:%s320] %v329
                %v331 = vld [vmem:[%s327 + $0x18] sm:%s320]
                %332 = vst [vmem:[%s328 + $0x8] sm:%s320] %v331
              $region99: #{ann2d_forward.1} parent=93 // loop_footer
                %s326 = sadd.s32 1, %s322
              $region100: #{ann2d_forward.1} parent=93 // loop_footer_branch
                %321 = sbr.rel target = $region96
              $region101: #{ann2d_forward.1} parent=93 // loop_exit
                _
            $region94: #{ann2d_forward.1} parent=85 // pred_fallthru
              _
          $region86: #{ann2d_forward.1} parent=81 // pred_fallthru
            _
          %349 = vnop
        $region82: #{ann2d_forward.1} parent=39 // pred_fallthru
          _
      $region40: #{ann2d_forward.1} parent=5 // pred_fallthru
        _
      %p350 = scmp.le.s32.totalorder 1, %s14
      %p351 = scmp.lt.s32.totalorder %s14, 3
      %p352 = pnand %p350, %p351
      %p353 = pneg %p352
      // Predicated region
      $region117: #{ann2d_forward.1} parent=5 // pred_check
        _
      $region118: #{ann2d_forward.1} parent=5 // pred_check_branch
        %355 = sbr.rel (%p352) target = $region120
      $region119: #{ann2d_forward.1} parent=5 // pred_region
        %s356 = ssub.s32 %s14, 1
        %s357 = sand.u32 %s27, 1
        %s358 = sand.u32 %s27, 1
        %s359 = smul.addr %s358, 16
        %s360 = scalar_lea.vmem [#allocation2], %s359
        // Predicated region
        $region121: #{ann2d_forward.1} parent=119 // pred_check
          %p361 = pneg %p40
        $region122: #{ann2d_forward.1} parent=119 // pred_check_branch
          %363 = sbr.rel (%p361) target = $region124
        $region123: #{ann2d_forward.1} parent=119 // pred_region
          _
        $region124: #{ann2d_forward.1} parent=119 // pred_fallthru
          _
        %s364 = sand.u32 %s55, 1
        %s365 = sand.u32 %s55, 1
        %s366 = smul.addr %s365, 16
        %s367 = scalar_lea.vmem [#allocation3], %s366
        // Predicated region
        $region125: #{ann2d_forward.1} parent=119 // pred_check
          %p368 = pneg %p68
        $region126: #{ann2d_forward.1} parent=119 // pred_check_branch
          %370 = sbr.rel (%p368) target = $region128
        $region127: #{ann2d_forward.1} parent=119 // pred_region
          _
        $region128: #{ann2d_forward.1} parent=119 // pred_fallthru
          _
        %s371 = sand.u32 %s27, 1
        %s372 = sand.u32 %s27, 1
        %s373 = smul.addr %s372, 16
        %s374 = scalar_lea.vmem [#allocation2], %s373
        %p375 = pneg %p40
        %p376 = pneg %p37
        %s377 = sand.u32 %s55, 1
        %s378 = sand.u32 %s55, 1
        %s379 = smul.addr %s378, 16
        %s380 = scalar_lea.vmem [#allocation3], %s379
        %p381 = pneg %p68
        %p382 = pneg %p65
        %p383 = pneg %p89
        %p384 = pneg %p86
        %p385 = pneg %p110
        %p386 = pneg %p107
        %p387 = pneg %p131
        %p388 = pneg %p128
        %p389 = pneg %p152
        %p390 = pneg %p149
        %p391 = pneg %p173
        %p392 = pneg %p170
        %p393 = pneg %p194
        %p394 = pneg %p191
        %p395 = pneg %p220
        %p396 = pneg %p217
        %p397 = scmp.lt.s32.totalorder %s19, 1
        %s398 = scalar_select %p397, %s19, 1
        %s399 = smul.addr %s398, 2
        %s400 = scalar_lea.vmem %s8, %s399
        %s401 = sadd.s32 %s19, 1
        %p402 = scmp.lt.s32.totalorder %s19, 1
        %s403 = scalar_select %p402, %s19, 1
        %s404 = smul.addr %s403, 2
        %s405 = scalar_lea.vmem %s8, %s404
        %v406 = vld [vmem:[%s360] sm:$0xff]
        %v407 = vld [vmem:[%s360 + $0x8] sm:$0xff]
        %v408 = vld [vmem:[%s367] sm:$0xff]
        %v409 = vld [vmem:[%s367 + $0x8] sm:$0xff]
        %414 = vrot.lane.b32.xlu0 %v406, 127
        %v415 = vpop.permute.xlu0 %414
        %416 = vrot.lane.b32.xlu0 %v408, 127
        %v417 = vpop.permute.xlu0 %416
        %418 = vrot.lane.b32.xlu0 %v407, 127
        %v419 = vpop.permute.xlu0 %418
        %420 = vrot.lane.b32.xlu0 %v409, 127
        %v421 = vpop.permute.xlu0 %420
        %vm422 = vcmask 1039360
        %v423 = vsel %vm422, %v415, %v417
        %v424 = vsel %vm422, %v419, %v421
        %v427 = vadd.f32 %v406, %v423
        %v428 = vadd.f32 %v407, %v424
        %429 = vrot.lane.b32.xlu0 %v406, 126
        %v430 = vpop.permute.xlu0 %429
        %431 = vrot.lane.b32.xlu0 %v408, 126
        %v432 = vpop.permute.xlu0 %431
        %433 = vrot.lane.b32.xlu0 %v407, 126
        %v434 = vpop.permute.xlu0 %433
        %435 = vrot.lane.b32.xlu0 %v409, 126
        %v436 = vpop.permute.xlu0 %435
        %vm437 = vcmask 1031168
        %v438 = vsel %vm437, %v430, %v432
        %v439 = vsel %vm437, %v434, %v436
        %v442 = vadd.f32 %v427, %v438
        %v443 = vadd.f32 %v428, %v439
        %444 = vrot.lane.b32.xlu0 %v406, 125
        %v445 = vpop.permute.xlu0 %444
        %446 = vrot.lane.b32.xlu0 %v408, 125
        %v447 = vpop.permute.xlu0 %446
        %448 = vrot.lane.b32.xlu0 %v407, 125
        %v449 = vpop.permute.xlu0 %448
        %450 = vrot.lane.b32.xlu0 %v409, 125
        %v451 = vpop.permute.xlu0 %450
        %vm452 = vcmask 1022976
        %v453 = vsel %vm452, %v445, %v447
        %v454 = vsel %vm452, %v449, %v451
        %v457 = vadd.f32 %v442, %v453
        %v458 = vadd.f32 %v443, %v454
        %v459 = vld [vmem:[%s2] sm:$0xff]
        %v460 = vld [vmem:[%s2 + $0x8] sm:$0xff]
        %v461 = vld [vmem:[%s2 + $0x10] sm:$0xff]
        %v462 = vld [vmem:[%s2 + $0x18] sm:$0xff]
        %v463 = vld [vmem:[%s3] sm:$0xff]
        %v464 = vld [vmem:[%s3 + $0x8] sm:$0xff]
        %v465 = vld [vmem:[%s3 + $0x10] sm:$0xff]
        %v466 = vld [vmem:[%s3 + $0x18] sm:$0xff]
        %468 = vset.pattern.permute.xlu0 0
        %469 = vperm.xlu0 %468, %v463
        %v470 = vpop.permute.xlu0 %469
        %473 = vset.pattern.permute.xlu0 0
        %474 = vperm.xlu0 %473, %v464
        %v475 = vpop.permute.xlu0 %474
        %478 = vset.pattern.permute.xlu0 0
        %479 = vperm.xlu0 %478, %v465
        %v480 = vpop.permute.xlu0 %479
        %483 = vset.pattern.permute.xlu0 0
        %484 = vperm.xlu0 %483, %v466
        %v485 = vpop.permute.xlu0 %484
        %vm487 = vcmask 130048
        %v489 = vsel %vm487, %v459, 0
        %v492 = vsel %vm487, %v460, 0
        %v495 = vsel %vm487, %v461, 0
        %v498 = vsel %vm487, %v462, 0
        %500 = vmatprep.subr.mxu0 0.0
        %501 = vmatpush1.msra.mxu0 0.0
        %502 = vmatprep.subr.mxu0 0.0
        %503 = vmatpush1.msra.mxu0 0.0
        %504 = vmatprep.subr.mxu0 0.0
        %505 = vmatpush1.msra.mxu0 0.0
        %506 = vmatprep.subr.mxu0 0.0
        %507 = vmatpush1.msra.mxu0 0.0
        %508 = vmatprep.subr.mxu0 0.0
        %509 = vmatpush1.msra.mxu0 0.0
        %510 = vmatprep.subr.mxu0 0.0
        %511 = vmatpush1.msra.mxu0 0.0
        %512 = vmatprep.subr.mxu0 0.0
        %513 = vmatpush1.msra.mxu0 0.0
        %514 = vmatprep.subr.mxu0 0.0
        %515 = vmatpush1.msra.mxu0 0.0
        %516 = vmatprep.subr.mxu0 0.0
        %517 = vmatpush1.msra.mxu0 0.0
        %518 = vmatprep.subr.mxu0 0.0
        %519 = vmatpush1.msra.mxu0 0.0
        %520 = vmatprep.subr.mxu0 0.0
        %521 = vmatpush1.msra.mxu0 0.0
        %522 = vmatprep.subr.mxu0 0.0
        %523 = vmatpush1.msra.mxu0 0.0
        %524 = vmatprep.subr.mxu0 0.0
        %525 = vmatpush1.msra.mxu0 0.0
        %526 = vmatprep.subr.mxu0 0.0
        %527 = vmatpush1.msra.mxu0 0.0
        %528 = vmatprep.subr.mxu0 0.0
        %529 = vmatpush1.msra.mxu0 %v458
        %530 = vmatprep.subr.mxu0 0.0
        %531 = vmatpush1.msra.mxu0 %v457
        %532 = vmatprep.subr.mxu0 0.0
        %533 = vmatpush2.msra.mxu0 0.0
        %534 = vmatprep.subr.mxu0 0.0
        %535 = vmatpush2.msra.mxu0 0.0
        %536 = vmatprep.subr.mxu0 0.0
        %537 = vmatpush2.msra.mxu0 0.0
        %538 = vmatprep.subr.mxu0 0.0
        %539 = vmatpush2.msra.mxu0 0.0
        %540 = vmatprep.subr.mxu0 0.0
        %541 = vmatpush2.msra.mxu0 0.0
        %542 = vmatprep.subr.mxu0 0.0
        %543 = vmatpush2.msra.mxu0 0.0
        %544 = vmatprep.subr.mxu0 0.0
        %545 = vmatpush2.msra.mxu0 0.0
        %546 = vmatprep.subr.mxu0 0.0
        %547 = vmatpush2.msra.mxu0 0.0
        %548 = vmatprep.subr.mxu0 0.0
        %549 = vmatpush2.msra.mxu0 0.0
        %550 = vmatprep.subr.mxu0 0.0
        %551 = vmatpush2.msra.mxu0 0.0
        %552 = vmatprep.subr.mxu0 0.0
        %553 = vmatpush2.msra.mxu0 0.0
        %554 = vmatprep.subr.mxu0 0.0
        %555 = vmatpush2.msra.mxu0 0.0
        %556 = vmatprep.subr.mxu0 0.0
        %557 = vmatpush2.msra.mxu0 0.0
        %558 = vmatprep.subr.mxu0 0.0
        %559 = vmatpush2.msra.mxu0 0.0
        %560 = vmatprep.subr.mxu0 0.0
        %561 = vmatpush2.msra.mxu0 0.0
        %562 = vmatprep.subr.mxu0 0.0
        %563 = vmatpush2.msra.mxu0 0.0
        %564 = vmatprep.mubr.f32.mxu0 0.0
        %565 = vmatmul.mubr.f32.gmra.mxu0 %v489
        %v566 = vpop.f32.mrf.mxu0
        %v567 = vadd.f32 %v470, %v566
        %v568 = vpop.f32.mrf.mxu0
        %569 = vmatprep.mubr.f32.mxu0 0.0
        %570 = vmatmul.mubr.f32.gmra.mxu0 %v492
        %v571 = vpop.f32.mrf.mxu0
        %v572 = vadd.f32 %v475, %v571
        %v573 = vpop.f32.mrf.mxu0
        %574 = vmatprep.mubr.f32.mxu0 0.0
        %575 = vmatmul.mubr.f32.gmra.mxu0 %v495
        %v576 = vpop.f32.mrf.mxu0
        %v577 = vadd.f32 %v480, %v576
        %v578 = vpop.f32.mrf.mxu0
        %579 = vmatprep.mubr.f32.mxu0 0.0
        %580 = vmatmul.mubr.f32.gmra.mxu0 %v498
        %v581 = vpop.f32.mrf.mxu0
        %v582 = vadd.f32 %v485, %v581
        %v583 = vpop.f32.mrf.mxu0
        %584 = vdwg.mxu0
        %v585 = vmax.f32 %v567, 0.0
        %v586 = vmax.f32 %v572, 0.0
        %v587 = vmax.f32 %v577, 0.0
        %v588 = vmax.f32 %v582, 0.0
        %v589 = vld [vmem:[%s4] sm:$0xff]
        %v590 = vld [vmem:[%s4 + $0x8] sm:$0xff]
        %v591 = vld [vmem:[%s4 + $0x10] sm:$0xff]
        %v592 = vld [vmem:[%s4 + $0x18] sm:$0xff]
        %v593 = vld [vmem:[%s4 + $0x20] sm:$0xff]
        %v594 = vld [vmem:[%s4 + $0x28] sm:$0xff]
        %v595 = vld [vmem:[%s5] sm:$0xff]
        %v596 = vld [vmem:[%s5 + $0x8] sm:$0xff]
        %v597 = vld [vmem:[%s5 + $0x10] sm:$0xff]
        %v598 = vld [vmem:[%s5 + $0x18] sm:$0xff]
        %v599 = vld [vmem:[%s5 + $0x20] sm:$0xff]
        %v600 = vld [vmem:[%s5 + $0x28] sm:$0xff]
        %602 = vset.pattern.permute.xlu0 0
        %603 = vperm.xlu0 %602, %v595
        %v604 = vpop.permute.xlu0 %603
        %607 = vset.pattern.permute.xlu0 0
        %608 = vperm.xlu0 %607, %v596
        %v609 = vpop.permute.xlu0 %608
        %612 = vset.pattern.permute.xlu0 0
        %613 = vperm.xlu0 %612, %v597
        %v614 = vpop.permute.xlu0 %613
        %617 = vset.pattern.permute.xlu0 0
        %618 = vperm.xlu0 %617, %v598
        %v619 = vpop.permute.xlu0 %618
        %622 = vset.pattern.permute.xlu0 0
        %623 = vperm.xlu0 %622, %v599
        %v624 = vpop.permute.xlu0 %623
        %627 = vset.pattern.permute.xlu0 0
        %628 = vperm.xlu0 %627, %v600
        %v629 = vpop.permute.xlu0 %628
        %vm631 = vcmask 261120
        %v633 = vsel %vm631, %v589, 0
        %v636 = vsel %vm631, %v590, 0
        %v639 = vsel %vm631, %v591, 0
        %v642 = vsel %vm631, %v592, 0
        %v645 = vsel %vm631, %v593, 0
        %v648 = vsel %vm631, %v594, 0
        %650 = vmatprep.subr.mxu0 0.0
        %651 = vmatpush1.msra.mxu0 0.0
        %652 = vmatprep.subr.mxu0 0.0
        %653 = vmatpush1.msra.mxu0 0.0
        %654 = vmatprep.subr.mxu0 0.0
        %655 = vmatpush1.msra.mxu0 0.0
        %656 = vmatprep.subr.mxu0 0.0
        %657 = vmatpush1.msra.mxu0 0.0
        %658 = vmatprep.subr.mxu0 0.0
        %659 = vmatpush1.msra.mxu0 0.0
        %660 = vmatprep.subr.mxu0 0.0
        %661 = vmatpush1.msra.mxu0 0.0
        %662 = vmatprep.subr.mxu0 0.0
        %663 = vmatpush1.msra.mxu0 0.0
        %664 = vmatprep.subr.mxu0 0.0
        %665 = vmatpush1.msra.mxu0 0.0
        %666 = vmatprep.subr.mxu0 0.0
        %667 = vmatpush1.msra.mxu0 0.0
        %668 = vmatprep.subr.mxu0 0.0
        %669 = vmatpush1.msra.mxu0 0.0
        %670 = vmatprep.subr.mxu0 0.0
        %671 = vmatpush1.msra.mxu0 0.0
        %672 = vmatprep.subr.mxu0 0.0
        %673 = vmatpush1.msra.mxu0 0.0
        %674 = vmatprep.subr.mxu0 0.0
        %675 = vmatpush1.msra.mxu0 %v588
        %676 = vmatprep.subr.mxu0 0.0
        %677 = vmatpush1.msra.mxu0 %v587
        %678 = vmatprep.subr.mxu0 0.0
        %679 = vmatpush1.msra.mxu0 %v586
        %680 = vmatprep.subr.mxu0 0.0
        %681 = vmatpush1.msra.mxu0 %v585
        %682 = vmatprep.subr.mxu0 0.0
        %683 = vmatpush2.msra.mxu0 0.0
        %684 = vmatprep.subr.mxu0 0.0
        %685 = vmatpush2.msra.mxu0 0.0
        %686 = vmatprep.subr.mxu0 0.0
        %687 = vmatpush2.msra.mxu0 0.0
        %688 = vmatprep.subr.mxu0 0.0
        %689 = vmatpush2.msra.mxu0 0.0
        %690 = vmatprep.subr.mxu0 0.0
        %691 = vmatpush2.msra.mxu0 0.0
        %692 = vmatprep.subr.mxu0 0.0
        %693 = vmatpush2.msra.mxu0 0.0
        %694 = vmatprep.subr.mxu0 0.0
        %695 = vmatpush2.msra.mxu0 0.0
        %696 = vmatprep.subr.mxu0 0.0
        %697 = vmatpush2.msra.mxu0 0.0
        %698 = vmatprep.subr.mxu0 0.0
        %699 = vmatpush2.msra.mxu0 0.0
        %700 = vmatprep.subr.mxu0 0.0
        %701 = vmatpush2.msra.mxu0 0.0
        %702 = vmatprep.subr.mxu0 0.0
        %703 = vmatpush2.msra.mxu0 0.0
        %704 = vmatprep.subr.mxu0 0.0
        %705 = vmatpush2.msra.mxu0 0.0
        %706 = vmatprep.subr.mxu0 0.0
        %707 = vmatpush2.msra.mxu0 0.0
        %708 = vmatprep.subr.mxu0 0.0
        %709 = vmatpush2.msra.mxu0 0.0
        %710 = vmatprep.subr.mxu0 0.0
        %711 = vmatpush2.msra.mxu0 0.0
        %712 = vmatprep.subr.mxu0 0.0
        %713 = vmatpush2.msra.mxu0 0.0
        %714 = vmatprep.mubr.f32.mxu0 0.0
        %715 = vmatmul.mubr.f32.gmra.mxu0 %v633
        %v716 = vpop.f32.mrf.mxu0
        %v717 = vadd.f32 %v604, %v716
        %v718 = vpop.f32.mrf.mxu0
        %719 = vmatprep.mubr.f32.mxu0 0.0
        %720 = vmatmul.mubr.f32.gmra.mxu0 %v636
        %v721 = vpop.f32.mrf.mxu0
        %v722 = vadd.f32 %v609, %v721
        %v723 = vpop.f32.mrf.mxu0
        %724 = vmatprep.mubr.f32.mxu0 0.0
        %725 = vmatmul.mubr.f32.gmra.mxu0 %v639
        %v726 = vpop.f32.mrf.mxu0
        %v727 = vadd.f32 %v614, %v726
        %v728 = vpop.f32.mrf.mxu0
        %729 = vmatprep.mubr.f32.mxu0 0.0
        %730 = vmatmul.mubr.f32.gmra.mxu0 %v642
        %v731 = vpop.f32.mrf.mxu0
        %v732 = vadd.f32 %v619, %v731
        %v733 = vpop.f32.mrf.mxu0
        %734 = vmatprep.mubr.f32.mxu0 0.0
        %735 = vmatmul.mubr.f32.gmra.mxu0 %v645
        %v736 = vpop.f32.mrf.mxu0
        %v737 = vadd.f32 %v624, %v736
        %v738 = vpop.f32.mrf.mxu0
        %739 = vmatprep.mubr.f32.mxu0 0.0
        %740 = vmatmul.mubr.f32.gmra.mxu0 %v648
        %v741 = vpop.f32.mrf.mxu0
        %v742 = vadd.f32 %v629, %v741
        %v743 = vpop.f32.mrf.mxu0
        %744 = vdwg.mxu0
        %v745 = vmax.f32 %v717, 0.0
        %v746 = vmax.f32 %v722, 0.0
        %v747 = vmax.f32 %v727, 0.0
        %v748 = vmax.f32 %v732, 0.0
        %v749 = vmax.f32 %v737, 0.0
        %v750 = vmax.f32 %v742, 0.0
        %v751 = vld [vmem:[%s6] sm:$0x3]
        %v752 = vld [vmem:[%s7] sm:$0x3]
        %754 = vset.pattern.permute.xlu0 0
        %755 = vperm.xlu0 %754, %v752
        %v756 = vpop.permute.xlu0 %755
        %vm758 = vcmask 392192
        %v760 = vsel %vm758, %v751, 0
        %762 = vmatprep.subr.mxu0 0.0
        %763 = vmatpush1.msra.mxu0 0.0
        %764 = vmatprep.subr.mxu0 0.0
        %765 = vmatpush1.msra.mxu0 0.0
        %766 = vmatprep.subr.mxu0 0.0
        %767 = vmatpush1.msra.mxu0 0.0
        %768 = vmatprep.subr.mxu0 0.0
        %769 = vmatpush1.msra.mxu0 0.0
        %770 = vmatprep.subr.mxu0 0.0
        %771 = vmatpush1.msra.mxu0 0.0
        %772 = vmatprep.subr.mxu0 0.0
        %773 = vmatpush1.msra.mxu0 0.0
        %774 = vmatprep.subr.mxu0 0.0
        %775 = vmatpush1.msra.mxu0 0.0
        %776 = vmatprep.subr.mxu0 0.0
        %777 = vmatpush1.msra.mxu0 0.0
        %778 = vmatprep.subr.mxu0 0.0
        %779 = vmatpush1.msra.mxu0 0.0
        %780 = vmatprep.subr.mxu0 0.0
        %781 = vmatpush1.msra.mxu0 0.0
        %782 = vmatprep.subr.mxu0 0.0
        %783 = vmatpush1.msra.mxu0 %v750
        %784 = vmatprep.subr.mxu0 0.0
        %785 = vmatpush1.msra.mxu0 %v749
        %786 = vmatprep.subr.mxu0 0.0
        %787 = vmatpush1.msra.mxu0 %v748
        %788 = vmatprep.subr.mxu0 0.0
        %789 = vmatpush1.msra.mxu0 %v747
        %790 = vmatprep.subr.mxu0 0.0
        %791 = vmatpush1.msra.mxu0 %v746
        %792 = vmatprep.subr.mxu0 0.0
        %793 = vmatpush1.msra.mxu0 %v745
        %794 = vmatprep.subr.mxu0 0.0
        %795 = vmatpush2.msra.mxu0 0.0
        %796 = vmatprep.subr.mxu0 0.0
        %797 = vmatpush2.msra.mxu0 0.0
        %798 = vmatprep.subr.mxu0 0.0
        %799 = vmatpush2.msra.mxu0 0.0
        %800 = vmatprep.subr.mxu0 0.0
        %801 = vmatpush2.msra.mxu0 0.0
        %802 = vmatprep.subr.mxu0 0.0
        %803 = vmatpush2.msra.mxu0 0.0
        %804 = vmatprep.subr.mxu0 0.0
        %805 = vmatpush2.msra.mxu0 0.0
        %806 = vmatprep.subr.mxu0 0.0
        %807 = vmatpush2.msra.mxu0 0.0
        %808 = vmatprep.subr.mxu0 0.0
        %809 = vmatpush2.msra.mxu0 0.0
        %810 = vmatprep.subr.mxu0 0.0
        %811 = vmatpush2.msra.mxu0 0.0
        %812 = vmatprep.subr.mxu0 0.0
        %813 = vmatpush2.msra.mxu0 0.0
        %814 = vmatprep.subr.mxu0 0.0
        %815 = vmatpush2.msra.mxu0 0.0
        %816 = vmatprep.subr.mxu0 0.0
        %817 = vmatpush2.msra.mxu0 0.0
        %818 = vmatprep.subr.mxu0 0.0
        %819 = vmatpush2.msra.mxu0 0.0
        %820 = vmatprep.subr.mxu0 0.0
        %821 = vmatpush2.msra.mxu0 0.0
        %822 = vmatprep.subr.mxu0 0.0
        %823 = vmatpush2.msra.mxu0 0.0
        %824 = vmatprep.subr.mxu0 0.0
        %825 = vmatpush2.msra.mxu0 0.0
        %826 = vmatprep.mubr.f32.mxu0 0.0
        %827 = vmatmul.mubr.f32.gmra.mxu0 %v760
        %v828 = vpop.f32.mrf.mxu0
        %v829 = vadd.f32 %v756, %v828
        %v830 = vpop.f32.mrf.mxu0
        %831 = vdwg.mxu0
        %s832 = smul.u32 %s19, 128
        %p833 = scmp.lt.s32.totalorder %s832, 3
        // Predicated region
        $region129: #{ann2d_forward.1} parent=119 // pred_check
          %p834 = pneg %p833
        $region130: #{ann2d_forward.1} parent=119 // pred_check_branch
          %836 = sbr.rel (%p834) target = $region132
        $region131: #{ann2d_forward.1} parent=119 // pred_region
          %v837 = vlaneseq
          %v838 = vand.u32 %v837, 127
          %v839 = vstv %s832
          %v840 = vadd.s32 %v839, %v838
          %vm841 = vcmp.ge.s32.totalorder %v840, 3
          %v842 = vsel %vm841, %v829, 0.0
          %843 = vst [vmem:[%s405] sm:$0x3] %v842
        $region132: #{ann2d_forward.1} parent=119 // pred_fallthru
          _
        %p844 = scmp.ge.s32.totalorder %s832, 3
        // Predicated region
        $region133: #{ann2d_forward.1} parent=119 // pred_check
          %p845 = pneg %p844
        $region134: #{ann2d_forward.1} parent=119 // pred_check_branch
          %847 = sbr.rel (%p845) target = $region136
        $region135: #{ann2d_forward.1} parent=119 // pred_region
          %848 = vst [vmem:[%s405] sm:$0x3] %v829
        $region136: #{ann2d_forward.1} parent=119 // pred_fallthru
          _
        %p849 = scmp.lt.s32.totalorder %s19, 1
        %s850 = scalar_select %p849, %s19, 1
        %s851 = smul.addr %s850, 2
        %s852 = scalar_lea.vmem %s8, %s851
        // Predicated region
        $region137: #{ann2d_forward.1} parent=119 // pred_check
          %p853 = pneg %p217
        $region138: #{ann2d_forward.1} parent=119 // pred_check_branch
          %855 = sbr.rel (%p853) target = $region140
        $region139: #{ann2d_forward.1} parent=119 // pred_region
          _
        $region140: #{ann2d_forward.1} parent=119 // pred_fallthru
          _
      $region120: #{ann2d_forward.1} parent=5 // pred_fallthru
        _
      %p856 = scmp.le.s32.totalorder 2, %s14
      // Predicated region
      $region141: #{ann2d_forward.1} parent=5 // pred_check
        %p857 = pneg %p856
      $region142: #{ann2d_forward.1} parent=5 // pred_check_branch
        %859 = sbr.rel (%p857) target = $region144
      $region143: #{ann2d_forward.1} parent=5 // pred_region
        %s860 = ssub.s32 %s14, 2
        // Predicated region
        $region145: #{ann2d_forward.1} parent=143 // pred_check
          %p861 = pneg %p223
        $region146: #{ann2d_forward.1} parent=143 // pred_check_branch
          %863 = sbr.rel (%p861) target = $region148
        $region147: #{ann2d_forward.1} parent=143 // pred_region
          %p864 = scmp.lt.s32.totalorder %s20, 1
          %s865 = scalar_select %p864, %s20, 1
          %s866 = smul.addr %s865, 2
          %s867 = scalar_lea.vmem %s8, %s866
        $region148: #{ann2d_forward.1} parent=143 // pred_fallthru
          _
      $region144: #{ann2d_forward.1} parent=5 // pred_fallthru
        _
    $region6: #{ann2d_forward.1} parent=1 // loop_footer
      %s18 = sadd.s32 1, %s14
    $region7: #{ann2d_forward.1} parent=1 // loop_footer_branch
      %13 = sbr.rel target = $region3
    $region8: #{ann2d_forward.1} parent=1 // loop_exit
      _

</llo_original>
